<compile_context>
chip_gen: v6e
topology: v6e:2x2x1
jax: 0.10.0
libtpu: 0.0.40
codegen_flags: <defaults>
</compile_context>

<pallas_src>
import jax
import jax.numpy as jnp
from jax.experimental import pallas as pl
from jax.experimental.pallas import tpu as pltpu

LANE = 128
_MAX_LANE_WIDTH = 8192  # widest last-dim we try for lane-dense stores


def _scale_kernel(scale_ref, x_ref, o_ref):
    # scale_ref: (1,) f32 scalar in SMEM (32-bit scalar path).
    # Cast the scalar (1 op) to the output dtype so the whole tile's math stays
    # in the narrow dtype when x/out are bf16/f16/int8.
    s = scale_ref[0].astype(o_ref.dtype)
    o_ref[...] = x_ref[...].astype(o_ref.dtype) * s


def _chip_config():
    """Returns (tile_bytes, use_core_parallel, vmem_limit_bytes) for the local TPU."""
    kind = ""
    try:
        kind = jax.devices()[0].device_kind.lower()
    except Exception:  # no devices / unexpected backend: fall through to safe default
        pass
    if "v7" in kind:
        # 2 TCs/chip, ~3.2 TB/s per TC; 8 MiB tiles double-buffered in+out = 32 MiB,
        # so raise the scoped VMEM limit to 48 MiB (64 MiB physical per TC).
        return 8 * 1024 * 1024, True, 48 * 1024 * 1024
    if "v6" in kind:
        # ~1.3-1.4 TB/s; 4 MiB tiles -> 16 MiB double-buffered, well inside the
        # 32 MiB scoped default. No limit override needed.
        return 4 * 1024 * 1024, False, None
    # v5e and unknown chips: 2 MiB tiles (8 MiB double-buffered) fit the 16 MiB
    # scoped-VMEM default; at ~820 GB/s the per-step overhead is already <7%.
    return 2 * 1024 * 1024, False, None


def scale_layer(x: jax.Array, scale: jax.Array) -> jax.Array:
    """out = x * scale, with `scale` a shape-(1,) parameter (PyTorch ScaleLayer)."""
    orig_shape = x.shape
    # Match PyTorch type promotion for input * parameter.
    out_dtype = jnp.result_type(x.dtype, scale.dtype)
    n = x.size

    # Degenerate / non-128-multiple sizes: XLA's fused elementwise multiply is
    # already at the HBM roofline; padding into the kernel would only add extra
    # HBM copies around a purely mem-bound op.
    if n == 0 or n % LANE != 0:
        return (x * scale[0]).astype(out_dtype)

    # Widest lane-dense last dimension (multiple of 128) that divides n exactly:
    # unmasked full-width vector stores, zero padding, free contiguous reshape.
    width = LANE
    for w in (_MAX_LANE_WIDTH, 4096, 2048, 1024, 512, 256, 128):
        if n % w == 0:
            width = w
            break
    rows = n // width
    x2d = x.reshape(rows, width)  # contiguous reshape: no data movement

    x_itemsize = jnp.dtype(x.dtype).itemsize
    out_itemsize = jnp.dtype(out_dtype).itemsize

    # Dtype-aware native tile height: (8,128) f32, (16,128) bf16/f16, (32,128) int8/fp8.
    sublane = max(8, 32 // min(x_itemsize, out_itemsize))

    tile_bytes, core_parallel, vmem_limit = _chip_config()
    row_bytes = width * max(x_itemsize, out_itemsize)
    max_rows = max(sublane, tile_bytes // row_bytes)

    if rows <= max_rows:
        block_rows = rows                                   # single full-array block
    else:
        block_rows = (max_rows // sublane) * sublane        # native-tile multiple

    # v7x: guarantee >= 2 grid steps on multi-MiB inputs so CORE_PARALLEL can
    # actually split the stream across both TensorCores (each with its own HBM path).
    total_bytes = n * (x_itemsize + out_itemsize)
    if core_parallel and total_bytes >= (4 * 1024 * 1024) and rows >= 2 * sublane:
        half = -(-rows // 2)                                # ceil(rows / 2)
        half = -(-half // sublane) * sublane                # round up to native tile
        block_rows = min(block_rows, half)

    grid = (pl.cdiv(rows, block_rows),)

    # CORE_PARALLEL only helps (and only makes sense) with >= 2 steps on a 2-TC chip.
    if core_parallel and grid[0] >= 2:
        dim_sem = (pltpu.CORE_PARALLEL,)
    else:
        dim_sem = ("parallel",)

    cost = pl.CostEstimate(
        flops=n,
        transcendentals=0,
        bytes_accessed=n * (x_itemsize + out_itemsize) + 4,
    )

    out2d = pl.pallas_call(
        _scale_kernel,
        out_shape=jax.ShapeDtypeStruct((rows, width), out_dtype),
        grid=grid,
        in_specs=[
            pl.BlockSpec(memory_space=pltpu.SMEM),                  # scale scalar (f32)
            pl.BlockSpec((block_rows, width), lambda i: (i, 0)),    # x tile
        ],
        out_specs=pl.BlockSpec((block_rows, width), lambda i: (i, 0)),
        compiler_params=pltpu.CompilerParams(
            dimension_semantics=dim_sem,
            vmem_limit_bytes=vmem_limit,
        ),
        cost_estimate=cost,
    )(scale.astype(jnp.float32), x2d)

    return out2d.reshape(orig_shape)


if __name__ == "__main__":
    key = jax.random.PRNGKey(0)
    # NCHW input, small shape consistent with a conv-style autoencoder.
    x = jax.random.normal(key, (2, 4, 16, 16), dtype=jnp.float32)

    # Parameter init exactly as the module: FloatTensor([0.001]) -> shape (1,)
    init_value = 0.001
    scale = jnp.array([init_value], dtype=jnp.float32)

    out = scale_layer(x, scale)
    out = jax.block_until_ready(out)

    # Reference check against plain JAX (mirrors PyTorch broadcasting of a [1] param).
    ref = x * scale
    assert out.shape == x.shape
    assert out.dtype == ref.dtype
    assert jnp.allclose(out, ref, rtol=1e-6, atol=1e-6)

    print("KERNEL_OK")
</pallas_src>

<mosaic_0001>
module attributes {stable_mosaic.version = 11 : i64} {
  func.func @_scale_kernel(%arg0: i32, %arg1: memref<1xf32, #tpu.memory_space<smem>>, %arg2: memref<1x2048xf32, #tpu.memory_space<vmem>>, %arg3: memref<1x2048xf32, #tpu.memory_space<vmem>>) attributes {dimension_semantics = [#tpu.dimension_semantics<parallel>], iteration_bounds = array<i64: 1>, scalar_prefetch = 0 : i64, scratch_operands = 0 : i64, tpu.core_type = #tpu.core_type<tc>, window_params = [{transform_indices = @transform_0, window_bounds = array<i64: 1>}, {transform_indices = @transform_1, window_bounds = array<i64: 1, 2048>}, {transform_indices = @transform_2, window_bounds = array<i64: 1, 2048>}]} {
    %c0 = arith.constant 0 : index
    %0 = memref.load %arg1[%c0] : memref<1xf32, #tpu.memory_space<smem>>
    %c0_0 = arith.constant 0 : index
    %c0_1 = arith.constant 0 : index
    %1 = vector.load %arg2[%c0_0, %c0_1] : memref<1x2048xf32, #tpu.memory_space<vmem>>, vector<1x2048xf32>
    %2 = vector.broadcast %0 : f32 to vector<1x2048xf32>
    %3 = arith.mulf %1, %2 : vector<1x2048xf32>
    %c0_2 = arith.constant 0 : index
    %c0_3 = arith.constant 0 : index
    %4 = vector.load %arg3[%c0_2, %c0_3] : memref<1x2048xf32, #tpu.memory_space<vmem>>, vector<1x2048xf32>
    tpu.vector_store %arg3[%c0_2, %c0_3], %3 {strides = array<i32>} : memref<1x2048xf32, #tpu.memory_space<vmem>>, vector<1x2048xf32>,
    return
  }
  func.func @transform_0(%arg0: i32) -> i32 {
    %c0_i32 = arith.constant 0 : i32
    %c0_i32_0 = arith.constant 0 : i32
    return %c0_i32 : i32
  }
  func.func @transform_1(%arg0: i32) -> (i32, i32) {
    %c0_i32 = arith.constant 0 : i32
    %c0_i32_0 = arith.constant 0 : i32
    return %arg0, %c0_i32 : i32, i32
  }
  func.func @transform_2(%arg0: i32) -> (i32, i32) {
    %c0_i32 = arith.constant 0 : i32
    %c0_i32_0 = arith.constant 0 : i32
    return %arg0, %c0_i32 : i32, i32
  }
}

</mosaic_0001>

<llo_original>
// kernel: tpu_custom_call.1
$region0: #{tpu_custom_call.1}
  #allocation0 [shape = 'u32[]', space=smem, size = 0x4, offset = 0x4, fixed_abs, tag = 'smem constant byte address 0x4 - core index']
  #allocation1 [shape = 'u32[144,128]{1,0:T(1,128)}', space=vmem, size = 0x12000, scoped, tag = 'internal scratch']
  #allocation2 [shape = 'f32[1]{0:T(128)S(6)}', space=smem, size = 0x200, scoped, tag = 'scoped memory for tpu_custom_call.1']
  %s0 = inlined_call_operand.<no memory space> [shape: f32[1], index: 0, kind: input, shape index: {}]
  %s1 = inlined_call_operand.hbm [shape: f32[1,2048], index: 1, kind: input, shape index: {}]
  %s2 = inlined_call_operand.hbm [shape: f32[1,2048], index: 2, kind: output, shape index: {}]
  %s3 = sld [smem:[#allocation0]]
  $region22: #{tpu_custom_call.1} parent=0
    _
  %s5 = ssub.s32 1, %s3
  %s6 = scalar_select 0, %s5, %s3
  %7 = sst [smem:[#allocation2]] %s0
  $region1: #{tpu_custom_call.1} parent=0
    #allocation3 [shape = 'u8[8192]{0}', space=vmem, size = 0x2000, scoped, tag = 'input window, operand 1, single buffered']
    #allocation4 [shape = 's32[1]{0}', space=sflag, size = 0x4, scoped, tag = 'scoped memory for tpu_custom_call.1']
    #allocation5 [shape = 's32[1]{0}', space=sflag, size = 0x4, scoped, tag = 'scoped memory for tpu_custom_call.1']
    #allocation6 [shape = 'u8[8192]{0}', space=vmem, size = 0x2000, scoped, tag = 'output window, operand 0, single buffered']
    %8 = vsyncpa [#allocation4], 0
    %9 = vsyncpa [#allocation5], 0
    // Predicated region
    $region2: #{tpu_custom_call.1} parent=1 // pred_check
      _
    $region3: #{tpu_custom_call.1} parent=1 // pred_check_branch
      %11 = sbr.rel (0) target = $region5
    $region4: #{tpu_custom_call.1} parent=1 // pred_region
      _
    $region5: #{tpu_custom_call.1} parent=1 // pred_fallthru
      _
    // Predicated region
    $region6: #{tpu_custom_call.1} parent=1 // pred_check
      _
    $region7: #{tpu_custom_call.1} parent=1 // pred_check_branch
      %13 = sbr.rel (0) target = $region9
    $region8: #{tpu_custom_call.1} parent=1 // pred_region
      %s15 = ssub.s32 256, 256
      %16 = vsyncadd [#allocation4], %s15
      %s18 = sshll.u32 [#allocation3], 4
      %s19 = int_to_ptr.vmem [resolvable:$true] %s18
      %21 = dma.hbm_to_vmem [thread:$0]  %s1, 256, %s19, [#allocation4]
    $region9: #{tpu_custom_call.1} parent=1 // pred_fallthru
      _
    // Predicated region
    $region10: #{tpu_custom_call.1} parent=1 // pred_check
      _
    $region11: #{tpu_custom_call.1} parent=1 // pred_check_branch
      %23 = sbr.rel (0) target = $region13
    $region12: #{tpu_custom_call.1} parent=1 // pred_region
      %24 = dma.done [#allocation4], 256
    $region13: #{tpu_custom_call.1} parent=1 // pred_fallthru
      _
    %s25 = sld [smem:[#allocation2]]
    %v26 = vld [vmem:[#allocation3] sm:$0xff]
    %v27 = vld [vmem:[#allocation3 + $0x8] sm:$0xff]
    %v28 = vstv %s25
    %v29 = vmul.f32 %v26, %v28
    %v30 = vmul.f32 %v27, %v28
    %31 = vst [vmem:[#allocation6] sm:$0xff] %v29
    %32 = vst [vmem:[#allocation6 + $0x8] sm:$0xff] %v30
    // Predicated region
    $region14: #{tpu_custom_call.1} parent=1 // pred_check
      _
    $region15: #{tpu_custom_call.1} parent=1 // pred_check_branch
      %34 = sbr.rel (0) target = $region17
    $region16: #{tpu_custom_call.1} parent=1 // pred_region
      %s36 = ssub.s32 256, 256
      %37 = vsyncadd [#allocation5], %s36
      %s39 = sshll.u32 [#allocation6], 4
      %s40 = int_to_ptr.vmem [resolvable:$true] %s39
      %42 = dma.vmem_to_hbm [thread:$0]  %s40, 256, %s2, [#allocation5]
    $region17: #{tpu_custom_call.1} parent=1 // pred_fallthru
      _
    // Predicated region
    $region18: #{tpu_custom_call.1} parent=1 // pred_check
      _
    $region19: #{tpu_custom_call.1} parent=1 // pred_check_branch
      %44 = sbr.rel (0) target = $region21
    $region20: #{tpu_custom_call.1} parent=1 // pred_region
      %45 = dma.done [#allocation5], 256
    $region21: #{tpu_custom_call.1} parent=1 // pred_fallthru
      _
    %46 = vsyncpa [#allocation4], 1
    %47 = vsyncpa [#allocation5], 1

</llo_original>
